<compile_context>
chip_gen: v7x
topology: tpu7x:2x2x1
jax: 0.10.0
libtpu: 0.0.40
codegen_flags: <defaults>
</compile_context>

<pallas_src>
import functools

import jax
import jax.numpy as jnp
from jax.experimental import pallas as pl
from jax.experimental.pallas import tpu as pltpu


def _round_up(n, m):
    return ((n + m - 1) // m) * m


def _decoder_kernel(x_ref,
                    win_ref, bin_ref,
                    w1_ref, b1_ref,
                    w2_ref, b2_ref,
                    w3_ref, b3_ref,
                    out_ref):
    """One batch tile of the fused 4-layer MLP (weights resident in VMEM)."""
    x = x_ref[...]                                   # (TB, 2)

    # Layer 0: K=2 contraction done as two VPU broadcast-FMAs instead of a
    # degenerate MXU pass.
    h = jnp.tanh(x[:, 0:1] * win_ref[0:1, :]
                 + x[:, 1:2] * win_ref[1:2, :]
                 + bin_ref[...])

    # Layers 1..3 on the MXU with f32 accumulation.
    h = jnp.tanh(jnp.dot(h, w1_ref[...], preferred_element_type=jnp.float32)
                 + b1_ref[...])
    h = jnp.tanh(jnp.dot(h, w2_ref[...], preferred_element_type=jnp.float32)
                 + b2_ref[...])
    y = jnp.dot(h, w3_ref[...], preferred_element_type=jnp.float32) + b3_ref[...]

    out_ref[...] = y.astype(out_ref.dtype)


@functools.partial(jax.jit, static_argnames=("tile_b",))
def pendulum_decoder_multistep(x, params, *, tile_b=512):
    """x: [B, 2] float32; params: dict of [in,out] weights and [out] biases.

    Returns [B, D] float32 with D = params['w3'].shape[1].
    """
    win, bin_ = params["win"], params["bin"]
    w1, b1 = params["w1"], params["b1"]
    w2, b2 = params["w2"], params["b2"]
    w3, b3 = params["w3"], params["b3"]

    B = x.shape[0]
    H0, H1, H2, D = win.shape[1], w1.shape[1], w2.shape[1], w3.shape[1]

    # ---- lane-dense padding of all feature dims to multiples of 128 ----
    H0p, H1p, H2p, Dp = (_round_up(d, 128) for d in (H0, H1, H2, D))

    f32 = jnp.float32
    win_p = jnp.zeros((2, H0p), f32).at[:, :H0].set(win.astype(f32))
    w1_p = jnp.zeros((H0p, H1p), f32).at[:H0, :H1].set(w1.astype(f32))
    w2_p = jnp.zeros((H1p, H2p), f32).at[:H1, :H2].set(w2.astype(f32))
    w3_p = jnp.zeros((H2p, Dp), f32).at[:H2, :D].set(w3.astype(f32))
    bin_p = jnp.zeros((1, H0p), f32).at[0, :H0].set(bin_.astype(f32))
    b1_p = jnp.zeros((1, H1p), f32).at[0, :H1].set(b1.astype(f32))
    b2_p = jnp.zeros((1, H2p), f32).at[0, :H2].set(b2.astype(f32))
    b3_p = jnp.zeros((1, Dp), f32).at[0, :D].set(b3.astype(f32))

    # ---- batch tiling (TB multiple of 8, capped at tile_b) ----
    TB = min(tile_b, _round_up(B, 8))
    Bp = _round_up(B, TB)
    x_p = jnp.zeros((Bp, 2), f32).at[:B, :].set(x.astype(f32))

    grid = (Bp // TB,)

    const = lambda i: (0, 0)  # weights/biases: single resident block

    out_padded = pl.pallas_call(
        _decoder_kernel,
        out_shape=jax.ShapeDtypeStruct((Bp, Dp), jnp.float32),
        grid=grid,
        in_specs=[
            pl.BlockSpec((TB, 2), lambda i: (i, 0)),      # x tile
            pl.BlockSpec((2, H0p), const),                # Win
            pl.BlockSpec((1, H0p), const),                # bin
            pl.BlockSpec((H0p, H1p), const),              # W1
            pl.BlockSpec((1, H1p), const),                # b1
            pl.BlockSpec((H1p, H2p), const),              # W2
            pl.BlockSpec((1, H2p), const),                # b2
            pl.BlockSpec((H2p, Dp), const),               # W3
            pl.BlockSpec((1, Dp), const),                 # b3
        ],
        out_specs=pl.BlockSpec((TB, Dp), lambda i: (i, 0)),
        compiler_params=pltpu.CompilerParams(
            dimension_semantics=("parallel",)),
    )(x_p, win_p, bin_p, w1_p, b1_p, w2_p, b2_p, w3_p, b3_p)

    return out_padded[:B, :D]


def init_params(prediction_horizon, block_length, key):
    """Deterministic synthetic params (PyTorch-Linear-like uniform init)."""
    D = 2 * (prediction_horizon + 1) * block_length
    dims = [2, D - 30, D - 20, D - 10, D]
    names = ["in", "1", "2", "3"]
    params = {}
    keys = jax.random.split(key, 2 * len(names))
    for i, n in enumerate(names):
        fan_in, fan_out = dims[i], dims[i + 1]
        bound = 1.0 / jnp.sqrt(jnp.float32(fan_in))
        w = jax.random.uniform(keys[2 * i], (fan_in, fan_out),
                               minval=-bound, maxval=bound, dtype=jnp.float32)
        b = jax.random.uniform(keys[2 * i + 1], (fan_out,),
                               minval=-bound, maxval=bound, dtype=jnp.float32)
        params[f"w{n}" if n != "in" else "win"] = w
        params[f"b{n}" if n != "in" else "bin"] = b
    return params


def reference_forward(x, params):
    """Pure-JAX reference matching the PyTorch forward semantics."""
    h = jnp.tanh(x @ params["win"] + params["bin"])
    h = jnp.tanh(h @ params["w1"] + params["b1"])
    h = jnp.tanh(h @ params["w2"] + params["b2"])
    return h @ params["w3"] + params["b3"]


if __name__ == "__main__":
    prediction_horizon = 4
    block_length = 8          # D = 2 * 5 * 8 = 80 -> dims 2, 50, 60, 70, 80
    batch = 2

    key = jax.random.PRNGKey(0)
    k_x, k_p = jax.random.split(key)

    x = jax.random.normal(k_x, (batch, 2), dtype=jnp.float32)
    params = init_params(prediction_horizon, block_length, k_p)

    out = pendulum_decoder_multistep(x, params)
    out = jax.block_until_ready(out)

    ref = reference_forward(x, params)
    D = 2 * (prediction_horizon + 1) * block_length
    assert out.shape == (batch, D), out.shape
    assert jnp.allclose(out, ref, atol=1e-5, rtol=1e-5)

    print("KERNEL_OK")
</pallas_src>

<mosaic_0001>
module attributes {stable_mosaic.version = 11 : i64} {
  func.func @_decoder_kernel(%arg0: i32, %arg1: memref<8x2xf32, #tpu.memory_space<vmem>>, %arg2: memref<2x128xf32, #tpu.memory_space<vmem>>, %arg3: memref<1x128xf32, #tpu.memory_space<vmem>>, %arg4: memref<128x128xf32, #tpu.memory_space<vmem>>, %arg5: memref<1x128xf32, #tpu.memory_space<vmem>>, %arg6: memref<128x128xf32, #tpu.memory_space<vmem>>, %arg7: memref<1x128xf32, #tpu.memory_space<vmem>>, %arg8: memref<128x128xf32, #tpu.memory_space<vmem>>, %arg9: memref<1x128xf32, #tpu.memory_space<vmem>>, %arg10: memref<8x128xf32, #tpu.memory_space<vmem>>) attributes {dimension_semantics = [#tpu.dimension_semantics<parallel>], iteration_bounds = array<i64: 1>, scalar_prefetch = 0 : i64, scratch_operands = 0 : i64, tpu.core_type = #tpu.core_type<tc>, window_params = [{transform_indices = @transform_0, window_bounds = array<i64: 8, 2>}, {pipeline_mode = #tpu.pipeline_mode<synchronous>, transform_indices = @transform_1, window_bounds = array<i64: 2, 128>}, {pipeline_mode = #tpu.pipeline_mode<synchronous>, transform_indices = @transform_2, window_bounds = array<i64: 1, 128>}, {pipeline_mode = #tpu.pipeline_mode<synchronous>, transform_indices = @transform_3, window_bounds = array<i64: 128, 128>}, {pipeline_mode = #tpu.pipeline_mode<synchronous>, transform_indices = @transform_4, window_bounds = array<i64: 1, 128>}, {pipeline_mode = #tpu.pipeline_mode<synchronous>, transform_indices = @transform_5, window_bounds = array<i64: 128, 128>}, {pipeline_mode = #tpu.pipeline_mode<synchronous>, transform_indices = @transform_6, window_bounds = array<i64: 1, 128>}, {pipeline_mode = #tpu.pipeline_mode<synchronous>, transform_indices = @transform_7, window_bounds = array<i64: 128, 128>}, {pipeline_mode = #tpu.pipeline_mode<synchronous>, transform_indices = @transform_8, window_bounds = array<i64: 1, 128>}, {transform_indices = @transform_9, window_bounds = array<i64: 8, 128>}]} {
    %c0 = arith.constant 0 : index
    %c0_0 = arith.constant 0 : index
    %0 = vector.load %arg1[%c0, %c0_0] : memref<8x2xf32, #tpu.memory_space<vmem>>, vector<8x2xf32>
    %1 = vector.extract_strided_slice %0 {offsets = [0, 0], sizes = [8, 1], strides = [1, 1]} : vector<8x2xf32> to vector<8x1xf32>
    %c0_1 = arith.constant 0 : index
    %c0_2 = arith.constant 0 : index
    %2 = vector.load %arg2[%c0_1, %c0_2] : memref<2x128xf32, #tpu.memory_space<vmem>>, vector<1x128xf32>
    %3 = vector.broadcast %1 : vector<8x1xf32> to vector<8x128xf32>
    %4 = vector.broadcast %2 : vector<1x128xf32> to vector<8x128xf32>
    %5 = arith.mulf %3, %4 : vector<8x128xf32>
    %6 = vector.extract_strided_slice %0 {offsets = [0, 1], sizes = [8, 1], strides = [1, 1]} : vector<8x2xf32> to vector<8x1xf32>
    %c1 = arith.constant 1 : index
    %c0_3 = arith.constant 0 : index
    %7 = vector.load %arg2[%c1, %c0_3] : memref<2x128xf32, #tpu.memory_space<vmem>>, vector<1x128xf32>
    %8 = vector.broadcast %6 : vector<8x1xf32> to vector<8x128xf32>
    %9 = vector.broadcast %7 : vector<1x128xf32> to vector<8x128xf32>
    %10 = arith.mulf %8, %9 : vector<8x128xf32>
    %11 = arith.addf %5, %10 : vector<8x128xf32>
    %c0_4 = arith.constant 0 : index
    %c0_5 = arith.constant 0 : index
    %12 = vector.load %arg3[%c0_4, %c0_5] : memref<1x128xf32, #tpu.memory_space<vmem>>, vector<1x128xf32>
    %13 = vector.broadcast %12 : vector<1x128xf32> to vector<8x128xf32>
    %14 = arith.addf %11, %13 : vector<8x128xf32>
    %15 = math.tanh %14 : vector<8x128xf32>
    %c0_6 = arith.constant 0 : index
    %c0_7 = arith.constant 0 : index
    %16 = vector.load %arg4[%c0_6, %c0_7] : memref<128x128xf32, #tpu.memory_space<vmem>>, vector<128x128xf32>
    %cst = arith.constant dense<0.000000e+00> : vector<8x128xf32>
    %17 = tpu.matmul %15, %16, %cst {dimension_numbers = #tpu.dot_dimension_numbers<[1], [0], [0], [1], [0, 0, 1, 1], [], []>} : vector<8x128xf32>, vector<128x128xf32>, vector<8x128xf32> -> vector<8x128xf32>
    %c0_8 = arith.constant 0 : index
    %c0_9 = arith.constant 0 : index
    %18 = vector.load %arg5[%c0_8, %c0_9] : memref<1x128xf32, #tpu.memory_space<vmem>>, vector<1x128xf32>
    %19 = vector.broadcast %18 : vector<1x128xf32> to vector<8x128xf32>
    %20 = arith.addf %17, %19 : vector<8x128xf32>
    %21 = math.tanh %20 : vector<8x128xf32>
    %c0_10 = arith.constant 0 : index
    %c0_11 = arith.constant 0 : index
    %22 = vector.load %arg6[%c0_10, %c0_11] : memref<128x128xf32, #tpu.memory_space<vmem>>, vector<128x128xf32>
    %cst_12 = arith.constant dense<0.000000e+00> : vector<8x128xf32>
    %23 = tpu.matmul %21, %22, %cst_12 {dimension_numbers = #tpu.dot_dimension_numbers<[1], [0], [0], [1], [0, 0, 1, 1], [], []>} : vector<8x128xf32>, vector<128x128xf32>, vector<8x128xf32> -> vector<8x128xf32>
    %c0_13 = arith.constant 0 : index
    %c0_14 = arith.constant 0 : index
    %24 = vector.load %arg7[%c0_13, %c0_14] : memref<1x128xf32, #tpu.memory_space<vmem>>, vector<1x128xf32>
    %25 = vector.broadcast %24 : vector<1x128xf32> to vector<8x128xf32>
    %26 = arith.addf %23, %25 : vector<8x128xf32>
    %27 = math.tanh %26 : vector<8x128xf32>
    %c0_15 = arith.constant 0 : index
    %c0_16 = arith.constant 0 : index
    %28 = vector.load %arg8[%c0_15, %c0_16] : memref<128x128xf32, #tpu.memory_space<vmem>>, vector<128x128xf32>
    %cst_17 = arith.constant dense<0.000000e+00> : vector<8x128xf32>
    %29 = tpu.matmul %27, %28, %cst_17 {dimension_numbers = #tpu.dot_dimension_numbers<[1], [0], [0], [1], [0, 0, 1, 1], [], []>} : vector<8x128xf32>, vector<128x128xf32>, vector<8x128xf32> -> vector<8x128xf32>
    %c0_18 = arith.constant 0 : index
    %c0_19 = arith.constant 0 : index
    %30 = vector.load %arg9[%c0_18, %c0_19] : memref<1x128xf32, #tpu.memory_space<vmem>>, vector<1x128xf32>
    %31 = vector.broadcast %30 : vector<1x128xf32> to vector<8x128xf32>
    %32 = arith.addf %29, %31 : vector<8x128xf32>
    %c0_20 = arith.constant 0 : index
    %c0_21 = arith.constant 0 : index
    %33 = vector.load %arg10[%c0_20, %c0_21] : memref<8x128xf32, #tpu.memory_space<vmem>>, vector<8x128xf32>
    tpu.vector_store %arg10[%c0_20, %c0_21], %32 {strides = array<i32>} : memref<8x128xf32, #tpu.memory_space<vmem>>, vector<8x128xf32>,
    return
  }
  func.func @transform_0(%arg0: i32) -> (i32, i32) {
    %c0_i32 = arith.constant 0 : i32
    %c0_i32_0 = arith.constant 0 : i32
    return %arg0, %c0_i32 : i32, i32
  }
  func.func @transform_1(%arg0: i32) -> (i32, i32) {
    %c0_i32 = arith.constant 0 : i32
    %c0_i32_0 = arith.constant 0 : i32
    %c0_i32_1 = arith.constant 0 : i32
    return %c0_i32, %c0_i32_0 : i32, i32
  }
  func.func @transform_2(%arg0: i32) -> (i32, i32) {
    %c0_i32 = arith.constant 0 : i32
    %c0_i32_0 = arith.constant 0 : i32
    %c0_i32_1 = arith.constant 0 : i32
    return %c0_i32, %c0_i32_0 : i32, i32
  }
  func.func @transform_3(%arg0: i32) -> (i32, i32) {
    %c0_i32 = arith.constant 0 : i32
    %c0_i32_0 = arith.constant 0 : i32
    %c0_i32_1 = arith.constant 0 : i32
    return %c0_i32, %c0_i32_0 : i32, i32
  }
  func.func @transform_4(%arg0: i32) -> (i32, i32) {
    %c0_i32 = arith.constant 0 : i32
    %c0_i32_0 = arith.constant 0 : i32
    %c0_i32_1 = arith.constant 0 : i32
    return %c0_i32, %c0_i32_0 : i32, i32
  }
  func.func @transform_5(%arg0: i32) -> (i32, i32) {
    %c0_i32 = arith.constant 0 : i32
    %c0_i32_0 = arith.constant 0 : i32
    %c0_i32_1 = arith.constant 0 : i32
    return %c0_i32, %c0_i32_0 : i32, i32
  }
  func.func @transform_6(%arg0: i32) -> (i32, i32) {
    %c0_i32 = arith.constant 0 : i32
    %c0_i32_0 = arith.constant 0 : i32
    %c0_i32_1 = arith.constant 0 : i32
    return %c0_i32, %c0_i32_0 : i32, i32
  }
  func.func @transform_7(%arg0: i32) -> (i32, i32) {
    %c0_i32 = arith.constant 0 : i32
    %c0_i32_0 = arith.constant 0 : i32
    %c0_i32_1 = arith.constant 0 : i32
    return %c0_i32, %c0_i32_0 : i32, i32
  }
  func.func @transform_8(%arg0: i32) -> (i32, i32) {
    %c0_i32 = arith.constant 0 : i32
    %c0_i32_0 = arith.constant 0 : i32
    %c0_i32_1 = arith.constant 0 : i32
    return %c0_i32, %c0_i32_0 : i32, i32
  }
  func.func @transform_9(%arg0: i32) -> (i32, i32) {
    %c0_i32 = arith.constant 0 : i32
    %c0_i32_0 = arith.constant 0 : i32
    return %arg0, %c0_i32 : i32, i32
  }
}

</mosaic_0001>

<llo_original>
// kernel: pendulum_decoder_multistep.1
$region0: #{pendulum_decoder_multistep.1}
  #allocation0 [shape = 'u32[]', space=smem, size = 0x4, offset = 0x4, fixed_abs, tag = 'smem constant byte address 0x4 - core index']
  #allocation1 [shape = 'u32[144,128]{1,0:T(1,128)}', space=vmem, size = 0x12000, scoped, tag = 'internal scratch']
  %s0 = inlined_call_operand.vmem [shape: f32[8,2], index: 0, kind: input, shape index: {}]
  %s1 = inlined_call_operand.vmem [shape: f32[2,128], index: 1, kind: input, shape index: {}]
  %s2 = inlined_call_operand.vmem [shape: f32[1,128], index: 2, kind: input, shape index: {}]
  %s3 = inlined_call_operand.vmem [shape: f32[128,128], index: 3, kind: input, shape index: {}]
  %s4 = inlined_call_operand.vmem [shape: f32[1,128], index: 4, kind: input, shape index: {}]
  %s5 = inlined_call_operand.vmem [shape: f32[128,128], index: 5, kind: input, shape index: {}]
  %s6 = inlined_call_operand.vmem [shape: f32[1,128], index: 6, kind: input, shape index: {}]
  %s7 = inlined_call_operand.vmem [shape: f32[128,128], index: 7, kind: input, shape index: {}]
  %s8 = inlined_call_operand.vmem [shape: f32[1,128], index: 8, kind: input, shape index: {}]
  %s9 = inlined_call_operand.vmem [shape: f32[8,128], index: 9, kind: output, shape index: {}]
  %s10 = sld [smem:[#allocation0]]
  $region46: #{pendulum_decoder_multistep.1} parent=0
    _
  %s12 = ssub.s32 1, %s10
  %s13 = scalar_select 0, %s12, %s10
  // Predicated region
  $region2: #{pendulum_decoder_multistep.1} parent=0 // pred_check
    _
  $region3: #{pendulum_decoder_multistep.1} parent=0 // pred_check_branch
    %15 = sbr.rel (0) target = $region5
  $region4: #{pendulum_decoder_multistep.1} parent=0 // pred_region
    _
  $region5: #{pendulum_decoder_multistep.1} parent=0 // pred_fallthru
    _
  // Predicated region
  $region6: #{pendulum_decoder_multistep.1} parent=0 // pred_check
    _
  $region7: #{pendulum_decoder_multistep.1} parent=0 // pred_check_branch
    %17 = sbr.rel (0) target = $region9
  $region8: #{pendulum_decoder_multistep.1} parent=0 // pred_region
    _
  $region9: #{pendulum_decoder_multistep.1} parent=0 // pred_fallthru
    _
  // Predicated region
  $region10: #{pendulum_decoder_multistep.1} parent=0 // pred_check
    _
  $region11: #{pendulum_decoder_multistep.1} parent=0 // pred_check_branch
    %19 = sbr.rel (0) target = $region13
  $region12: #{pendulum_decoder_multistep.1} parent=0 // pred_region
    _
  $region13: #{pendulum_decoder_multistep.1} parent=0 // pred_fallthru
    _
  // Predicated region
  $region14: #{pendulum_decoder_multistep.1} parent=0 // pred_check
    _
  $region15: #{pendulum_decoder_multistep.1} parent=0 // pred_check_branch
    %21 = sbr.rel (0) target = $region17
  $region16: #{pendulum_decoder_multistep.1} parent=0 // pred_region
    _
  $region17: #{pendulum_decoder_multistep.1} parent=0 // pred_fallthru
    _
  // Predicated region
  $region18: #{pendulum_decoder_multistep.1} parent=0 // pred_check
    _
  $region19: #{pendulum_decoder_multistep.1} parent=0 // pred_check_branch
    %23 = sbr.rel (0) target = $region21
  $region20: #{pendulum_decoder_multistep.1} parent=0 // pred_region
    _
  $region21: #{pendulum_decoder_multistep.1} parent=0 // pred_fallthru
    _
  // Predicated region
  $region22: #{pendulum_decoder_multistep.1} parent=0 // pred_check
    _
  $region23: #{pendulum_decoder_multistep.1} parent=0 // pred_check_branch
    %25 = sbr.rel (0) target = $region25
  $region24: #{pendulum_decoder_multistep.1} parent=0 // pred_region
    _
  $region25: #{pendulum_decoder_multistep.1} parent=0 // pred_fallthru
    _
  // Predicated region
  $region26: #{pendulum_decoder_multistep.1} parent=0 // pred_check
    _
  $region27: #{pendulum_decoder_multistep.1} parent=0 // pred_check_branch
    %27 = sbr.rel (0) target = $region29
  $region28: #{pendulum_decoder_multistep.1} parent=0 // pred_region
    _
  $region29: #{pendulum_decoder_multistep.1} parent=0 // pred_fallthru
    _
  // Predicated region
  $region30: #{pendulum_decoder_multistep.1} parent=0 // pred_check
    _
  $region31: #{pendulum_decoder_multistep.1} parent=0 // pred_check_branch
    %29 = sbr.rel (0) target = $region33
  $region32: #{pendulum_decoder_multistep.1} parent=0 // pred_region
    _
  $region33: #{pendulum_decoder_multistep.1} parent=0 // pred_fallthru
    _
  // Predicated region
  $region34: #{pendulum_decoder_multistep.1} parent=0 // pred_check
    _
  $region35: #{pendulum_decoder_multistep.1} parent=0 // pred_check_branch
    %31 = sbr.rel (0) target = $region37
  $region36: #{pendulum_decoder_multistep.1} parent=0 // pred_region
    _
  $region37: #{pendulum_decoder_multistep.1} parent=0 // pred_fallthru
    _
  %v32 = vld [vmem:[%s0] sm:$0xff]
  %v33 = vld [vmem:[%s1] sm:$0x1]
  %35 = vset.pattern.permute.xlu0 0
  %36 = vperm.xlu0 %35, %v32
  %v37 = vpop.permute.xlu0 %36
  %v39 = vlaneseq
  %v40 = vshrl.u32 %v39, 7
  %v41 = vsub.s32 0, %v40
  %v42 = vrot.slane %v33, %v41
  %v43 = vmul.f32 %v37, %v42
  %v44 = vld [vmem:[%s1 + $0x1] sm:$0x1]
  %45 = vset.pattern.permute.xlu0 1
  %46 = vperm.xlu0 %45, %v32
  %v47 = vpop.permute.xlu0 %46
  %v49 = vlaneseq
  %v50 = vshrl.u32 %v49, 7
  %v51 = vsub.s32 0, %v50
  %v52 = vrot.slane %v44, %v51
  %v53 = vmul.f32 %v47, %v52
  %v54 = vadd.f32 %v43, %v53
  %v55 = vld [vmem:[%s2] sm:$0x1]
  %v57 = vlaneseq
  %v58 = vshrl.u32 %v57, 7
  %v59 = vsub.s32 0, %v58
  %v60 = vrot.slane %v55, %v59
  %v62 = vadd.f32 %v54, %v60
  %v63 = vtanh.pop %v62
  %v64 = vld [vmem:[%s3] sm:$0xff]
  %v65 = vld [vmem:[%s3 + $0x8] sm:$0xff]
  %v66 = vld [vmem:[%s3 + $0x10] sm:$0xff]
  %v67 = vld [vmem:[%s3 + $0x18] sm:$0xff]
  %v68 = vld [vmem:[%s3 + $0x20] sm:$0xff]
  %v69 = vld [vmem:[%s3 + $0x28] sm:$0xff]
  %v70 = vld [vmem:[%s3 + $0x30] sm:$0xff]
  %v71 = vld [vmem:[%s3 + $0x38] sm:$0xff]
  %v72 = vld [vmem:[%s3 + $0x40] sm:$0xff]
  %v73 = vld [vmem:[%s3 + $0x48] sm:$0xff]
  %v74 = vld [vmem:[%s3 + $0x50] sm:$0xff]
  %v75 = vld [vmem:[%s3 + $0x58] sm:$0xff]
  %v76 = vld [vmem:[%s3 + $0x60] sm:$0xff]
  %v77 = vld [vmem:[%s3 + $0x68] sm:$0xff]
  %v78 = vld [vmem:[%s3 + $0x70] sm:$0xff]
  %v79 = vld [vmem:[%s3 + $0x78] sm:$0xff]
  %v80 = vld [vmem:[%s4] sm:$0x1]
  %v82 = vlaneseq
  %v83 = vshrl.u32 %v82, 7
  %v84 = vsub.s32 0, %v83
  %v85 = vrot.slane %v80, %v84
  %87 = vmatprep.subr.mxu0 0.0
  %88 = vmatpush1.msra.mxu0 %v64
  %89 = vmatprep.subr.mxu0 0.0
  %90 = vmatpush1.msra.mxu0 %v65
  %91 = vmatprep.subr.mxu0 0.0
  %92 = vmatpush1.msra.mxu0 %v66
  %93 = vmatprep.subr.mxu0 0.0
  %94 = vmatpush1.msra.mxu0 %v67
  %95 = vmatprep.subr.mxu0 0.0
  %96 = vmatpush1.msra.mxu0 %v68
  %97 = vmatprep.subr.mxu0 0.0
  %98 = vmatpush1.msra.mxu0 %v69
  %99 = vmatprep.subr.mxu0 0.0
  %100 = vmatpush1.msra.mxu0 %v70
  %101 = vmatprep.subr.mxu0 0.0
  %102 = vmatpush1.msra.mxu0 %v71
  %103 = vmatprep.subr.mxu0 0.0
  %104 = vmatpush1.msra.mxu0 %v72
  %105 = vmatprep.subr.mxu0 0.0
  %106 = vmatpush1.msra.mxu0 %v73
  %107 = vmatprep.subr.mxu0 0.0
  %108 = vmatpush1.msra.mxu0 %v74
  %109 = vmatprep.subr.mxu0 0.0
  %110 = vmatpush1.msra.mxu0 %v75
  %111 = vmatprep.subr.mxu0 0.0
  %112 = vmatpush1.msra.mxu0 %v76
  %113 = vmatprep.subr.mxu0 0.0
  %114 = vmatpush1.msra.mxu0 %v77
  %115 = vmatprep.subr.mxu0 0.0
  %116 = vmatpush1.msra.mxu0 %v78
  %117 = vmatprep.subr.mxu0 0.0
  %118 = vmatpush1.msra.mxu0 %v79
  %119 = vmatprep.subr.mxu0 0.0
  %120 = vmatpush1.msra.mxu0 0.0
  %121 = vmatprep.subr.mxu0 0.0
  %122 = vmatpush1.msra.mxu0 0.0
  %123 = vmatprep.subr.mxu0 0.0
  %124 = vmatpush1.msra.mxu0 0.0
  %125 = vmatprep.subr.mxu0 0.0
  %126 = vmatpush1.msra.mxu0 0.0
  %127 = vmatprep.subr.mxu0 0.0
  %128 = vmatpush1.msra.mxu0 0.0
  %129 = vmatprep.subr.mxu0 0.0
  %130 = vmatpush1.msra.mxu0 0.0
  %131 = vmatprep.subr.mxu0 0.0
  %132 = vmatpush1.msra.mxu0 0.0
  %133 = vmatprep.subr.mxu0 0.0
  %134 = vmatpush1.msra.mxu0 0.0
  %135 = vmatprep.subr.mxu0 0.0
  %136 = vmatpush1.msra.mxu0 0.0
  %137 = vmatprep.subr.mxu0 0.0
  %138 = vmatpush1.msra.mxu0 0.0
  %139 = vmatprep.subr.mxu0 0.0
  %140 = vmatpush1.msra.mxu0 0.0
  %141 = vmatprep.subr.mxu0 0.0
  %142 = vmatpush1.msra.mxu0 0.0
  %143 = vmatprep.subr.mxu0 0.0
  %144 = vmatpush1.msra.mxu0 0.0
  %145 = vmatprep.subr.mxu0 0.0
  %146 = vmatpush1.msra.mxu0 0.0
  %147 = vmatprep.subr.mxu0 0.0
  %148 = vmatpush1.msra.mxu0 0.0
  %149 = vmatprep.subr.mxu0 0.0
  %150 = vmatpush1.msra.mxu0 0.0
  %151 = vmatprep.mubr.f32.mxu0 0.0
  %152 = vmatmul.mubr.f32.gmra.mrb[0].mxu0 %v63
  %v153 = vpop.f32.mrb[0].mxu0
  %v154 = vadd.f32 %v85, %v153
  %v155 = vpop.f32.mrb[0].mxu0
  %156 = vdwg.mxu0
  %v157 = vtanh.pop %v154
  %v158 = vld [vmem:[%s5] sm:$0xff]
  %v159 = vld [vmem:[%s5 + $0x8] sm:$0xff]
  %v160 = vld [vmem:[%s5 + $0x10] sm:$0xff]
  %v161 = vld [vmem:[%s5 + $0x18] sm:$0xff]
  %v162 = vld [vmem:[%s5 + $0x20] sm:$0xff]
  %v163 = vld [vmem:[%s5 + $0x28] sm:$0xff]
  %v164 = vld [vmem:[%s5 + $0x30] sm:$0xff]
  %v165 = vld [vmem:[%s5 + $0x38] sm:$0xff]
  %v166 = vld [vmem:[%s5 + $0x40] sm:$0xff]
  %v167 = vld [vmem:[%s5 + $0x48] sm:$0xff]
  %v168 = vld [vmem:[%s5 + $0x50] sm:$0xff]
  %v169 = vld [vmem:[%s5 + $0x58] sm:$0xff]
  %v170 = vld [vmem:[%s5 + $0x60] sm:$0xff]
  %v171 = vld [vmem:[%s5 + $0x68] sm:$0xff]
  %v172 = vld [vmem:[%s5 + $0x70] sm:$0xff]
  %v173 = vld [vmem:[%s5 + $0x78] sm:$0xff]
  %v174 = vld [vmem:[%s6] sm:$0x1]
  %v176 = vlaneseq
  %v177 = vshrl.u32 %v176, 7
  %v178 = vsub.s32 0, %v177
  %v179 = vrot.slane %v174, %v178
  %181 = vmatprep.subr.mxu0 0.0
  %182 = vmatpush1.msra.mxu0 %v158
  %183 = vmatprep.subr.mxu0 0.0
  %184 = vmatpush1.msra.mxu0 %v159
  %185 = vmatprep.subr.mxu0 0.0
  %186 = vmatpush1.msra.mxu0 %v160
  %187 = vmatprep.subr.mxu0 0.0
  %188 = vmatpush1.msra.mxu0 %v161
  %189 = vmatprep.subr.mxu0 0.0
  %190 = vmatpush1.msra.mxu0 %v162
  %191 = vmatprep.subr.mxu0 0.0
  %192 = vmatpush1.msra.mxu0 %v163
  %193 = vmatprep.subr.mxu0 0.0
  %194 = vmatpush1.msra.mxu0 %v164
  %195 = vmatprep.subr.mxu0 0.0
  %196 = vmatpush1.msra.mxu0 %v165
  %197 = vmatprep.subr.mxu0 0.0
  %198 = vmatpush1.msra.mxu0 %v166
  %199 = vmatprep.subr.mxu0 0.0
  %200 = vmatpush1.msra.mxu0 %v167
  %201 = vmatprep.subr.mxu0 0.0
  %202 = vmatpush1.msra.mxu0 %v168
  %203 = vmatprep.subr.mxu0 0.0
  %204 = vmatpush1.msra.mxu0 %v169
  %205 = vmatprep.subr.mxu0 0.0
  %206 = vmatpush1.msra.mxu0 %v170
  %207 = vmatprep.subr.mxu0 0.0
  %208 = vmatpush1.msra.mxu0 %v171
  %209 = vmatprep.subr.mxu0 0.0
  %210 = vmatpush1.msra.mxu0 %v172
  %211 = vmatprep.subr.mxu0 0.0
  %212 = vmatpush1.msra.mxu0 %v173
  %213 = vmatprep.subr.mxu0 0.0
  %214 = vmatpush1.msra.mxu0 0.0
  %215 = vmatprep.subr.mxu0 0.0
  %216 = vmatpush1.msra.mxu0 0.0
  %217 = vmatprep.subr.mxu0 0.0
  %218 = vmatpush1.msra.mxu0 0.0
  %219 = vmatprep.subr.mxu0 0.0
  %220 = vmatpush1.msra.mxu0 0.0
  %221 = vmatprep.subr.mxu0 0.0
  %222 = vmatpush1.msra.mxu0 0.0
  %223 = vmatprep.subr.mxu0 0.0
  %224 = vmatpush1.msra.mxu0 0.0
  %225 = vmatprep.subr.mxu0 0.0
  %226 = vmatpush1.msra.mxu0 0.0
  %227 = vmatprep.subr.mxu0 0.0
  %228 = vmatpush1.msra.mxu0 0.0
  %229 = vmatprep.subr.mxu0 0.0
  %230 = vmatpush1.msra.mxu0 0.0
  %231 = vmatprep.subr.mxu0 0.0
  %232 = vmatpush1.msra.mxu0 0.0
  %233 = vmatprep.subr.mxu0 0.0
  %234 = vmatpush1.msra.mxu0 0.0
  %235 = vmatprep.subr.mxu0 0.0
  %236 = vmatpush1.msra.mxu0 0.0
  %237 = vmatprep.subr.mxu0 0.0
  %238 = vmatpush1.msra.mxu0 0.0
  %239 = vmatprep.subr.mxu0 0.0
  %240 = vmatpush1.msra.mxu0 0.0
  %241 = vmatprep.subr.mxu0 0.0
  %242 = vmatpush1.msra.mxu0 0.0
  %243 = vmatprep.subr.mxu0 0.0
  %244 = vmatpush1.msra.mxu0 0.0
  %245 = vmatprep.mubr.f32.mxu0 0.0
  %246 = vmatmul.mubr.f32.gmra.mrb[0].mxu0 %v157
  %v247 = vpop.f32.mrb[0].mxu0
  %v248 = vadd.f32 %v179, %v247
  %v249 = vpop.f32.mrb[0].mxu0
  %250 = vdwg.mxu0
  %v251 = vtanh.pop %v248
  %v252 = vld [vmem:[%s7] sm:$0xff]
  %v253 = vld [vmem:[%s7 + $0x8] sm:$0xff]
  %v254 = vld [vmem:[%s7 + $0x10] sm:$0xff]
  %v255 = vld [vmem:[%s7 + $0x18] sm:$0xff]
  %v256 = vld [vmem:[%s7 + $0x20] sm:$0xff]
  %v257 = vld [vmem:[%s7 + $0x28] sm:$0xff]
  %v258 = vld [vmem:[%s7 + $0x30] sm:$0xff]
  %v259 = vld [vmem:[%s7 + $0x38] sm:$0xff]
  %v260 = vld [vmem:[%s7 + $0x40] sm:$0xff]
  %v261 = vld [vmem:[%s7 + $0x48] sm:$0xff]
  %v262 = vld [vmem:[%s7 + $0x50] sm:$0xff]
  %v263 = vld [vmem:[%s7 + $0x58] sm:$0xff]
  %v264 = vld [vmem:[%s7 + $0x60] sm:$0xff]
  %v265 = vld [vmem:[%s7 + $0x68] sm:$0xff]
  %v266 = vld [vmem:[%s7 + $0x70] sm:$0xff]
  %v267 = vld [vmem:[%s7 + $0x78] sm:$0xff]
  %v268 = vld [vmem:[%s8] sm:$0x1]
  %v270 = vlaneseq
  %v271 = vshrl.u32 %v270, 7
  %v272 = vsub.s32 0, %v271
  %v273 = vrot.slane %v268, %v272
  %275 = vmatprep.subr.mxu0 0.0
  %276 = vmatpush1.msra.mxu0 %v252
  %277 = vmatprep.subr.mxu0 0.0
  %278 = vmatpush1.msra.mxu0 %v253
  %279 = vmatprep.subr.mxu0 0.0
  %280 = vmatpush1.msra.mxu0 %v254
  %281 = vmatprep.subr.mxu0 0.0
  %282 = vmatpush1.msra.mxu0 %v255
  %283 = vmatprep.subr.mxu0 0.0
  %284 = vmatpush1.msra.mxu0 %v256
  %285 = vmatprep.subr.mxu0 0.0
  %286 = vmatpush1.msra.mxu0 %v257
  %287 = vmatprep.subr.mxu0 0.0
  %288 = vmatpush1.msra.mxu0 %v258
  %289 = vmatprep.subr.mxu0 0.0
  %290 = vmatpush1.msra.mxu0 %v259
  %291 = vmatprep.subr.mxu0 0.0
  %292 = vmatpush1.msra.mxu0 %v260
  %293 = vmatprep.subr.mxu0 0.0
  %294 = vmatpush1.msra.mxu0 %v261
  %295 = vmatprep.subr.mxu0 0.0
  %296 = vmatpush1.msra.mxu0 %v262
  %297 = vmatprep.subr.mxu0 0.0
  %298 = vmatpush1.msra.mxu0 %v263
  %299 = vmatprep.subr.mxu0 0.0
  %300 = vmatpush1.msra.mxu0 %v264
  %301 = vmatprep.subr.mxu0 0.0
  %302 = vmatpush1.msra.mxu0 %v265
  %303 = vmatprep.subr.mxu0 0.0
  %304 = vmatpush1.msra.mxu0 %v266
  %305 = vmatprep.subr.mxu0 0.0
  %306 = vmatpush1.msra.mxu0 %v267
  %307 = vmatprep.subr.mxu0 0.0
  %308 = vmatpush1.msra.mxu0 0.0
  %309 = vmatprep.subr.mxu0 0.0
  %310 = vmatpush1.msra.mxu0 0.0
  %311 = vmatprep.subr.mxu0 0.0
  %312 = vmatpush1.msra.mxu0 0.0
  %313 = vmatprep.subr.mxu0 0.0
  %314 = vmatpush1.msra.mxu0 0.0
  %315 = vmatprep.subr.mxu0 0.0
  %316 = vmatpush1.msra.mxu0 0.0
  %317 = vmatprep.subr.mxu0 0.0
  %318 = vmatpush1.msra.mxu0 0.0
  %319 = vmatprep.subr.mxu0 0.0
  %320 = vmatpush1.msra.mxu0 0.0
  %321 = vmatprep.subr.mxu0 0.0
  %322 = vmatpush1.msra.mxu0 0.0
  %323 = vmatprep.subr.mxu0 0.0
  %324 = vmatpush1.msra.mxu0 0.0
  %325 = vmatprep.subr.mxu0 0.0
  %326 = vmatpush1.msra.mxu0 0.0
  %327 = vmatprep.subr.mxu0 0.0
  %328 = vmatpush1.msra.mxu0 0.0
  %329 = vmatprep.subr.mxu0 0.0
  %330 = vmatpush1.msra.mxu0 0.0
  %331 = vmatprep.subr.mxu0 0.0
  %332 = vmatpush1.msra.mxu0 0.0
  %333 = vmatprep.subr.mxu0 0.0
  %334 = vmatpush1.msra.mxu0 0.0
  %335 = vmatprep.subr.mxu0 0.0
  %336 = vmatpush1.msra.mxu0 0.0
  %337 = vmatprep.subr.mxu0 0.0
  %338 = vmatpush1.msra.mxu0 0.0
  %339 = vmatprep.mubr.f32.mxu0 0.0
  %340 = vmatmul.mubr.f32.gmra.mrb[0].mxu0 %v251
  %v341 = vpop.f32.mrb[0].mxu0
  %v342 = vadd.f32 %v273, %v341
  %v343 = vpop.f32.mrb[0].mxu0
  %344 = vdwg.mxu0
  %345 = vst [vmem:[%s9] sm:$0xff] %v342
  // Predicated region
  $region38: #{pendulum_decoder_multistep.1} parent=0 // pred_check
    _
  $region39: #{pendulum_decoder_multistep.1} parent=0 // pred_check_branch
    %347 = sbr.rel (0) target = $region41
  $region40: #{pendulum_decoder_multistep.1} parent=0 // pred_region
    _
  $region41: #{pendulum_decoder_multistep.1} parent=0 // pred_fallthru
    _
  // Predicated region
  $region42: #{pendulum_decoder_multistep.1} parent=0 // pred_check
    _
  $region43: #{pendulum_decoder_multistep.1} parent=0 // pred_check_branch
    %349 = sbr.rel (0) target = $region45
  $region44: #{pendulum_decoder_multistep.1} parent=0 // pred_region
    _
  $region45: #{pendulum_decoder_multistep.1} parent=0 // pred_fallthru
    _

</llo_original>
